<compile_context>
chip_gen: v5e
topology: v5e:2x2
jax: 0.10.0
libtpu: 0.0.40
codegen_flags: <defaults>
</compile_context>

<pallas_src>
import jax
import jax.numpy as jnp
from jax import lax
from jax.experimental import pallas as pl
from jax.experimental.pallas import tpu as pltpu

BN_EPS = 1e-5


def _make_transition_kernel(N, C_in, C_out):
    """Build the fused BN+conv1x1+avgpool kernel for static (N, C_in, C_out)."""

    def kernel(x_ref, w_ref, b_ref, ph_ref, pw_ref, out_ref):
        # x_ref  : (N, C_in, H, W)   VMEM, whole batch (H on sublanes, W on lanes)
        # w_ref  : (C_out*C_in,)     SMEM, BN-folded 1x1 conv weights (scalars)
        # b_ref  : (C_out,)          SMEM, folded BN shift pushed through conv
        # ph_ref : (Ho, H)           VMEM, row-pair averaging matrix (0.5 entries)
        # pw_ref : (W, Wo)           VMEM, col-pair averaging matrix (0.5 entries)
        # out_ref: (N, C_out, Ho, Wo)
        ph = ph_ref[...]
        pw = pw_ref[...]
        for n in range(N):            # static unroll: N*C_out = 4 tiny tiles
            for o in range(C_out):
                # Folded BN + 1x1 conv as VPU broadcasted multiply-adds
                # (scalar weights from SMEM; no MXU for K=C_in=4).
                acc = w_ref[o * C_in] * x_ref[n, 0]            # (H, W) f32
                for i in range(1, C_in):
                    acc = acc + w_ref[o * C_in + i] * x_ref[n, i]
                # Separable 2x2/stride-2 average pool: P_H @ Y @ P_W.
                hp = jnp.dot(ph, acc,
                             preferred_element_type=jnp.float32)   # (Ho, W)
                pooled = jnp.dot(hp, pw,
                                 preferred_element_type=jnp.float32)  # (Ho, Wo)
                out_ref[n, o] = (pooled + b_ref[o]).astype(out_ref.dtype)

    return kernel


def _avg_pair_matrix(n_out, n_in, dtype=jnp.float32):
    """(n_out, n_in) matrix: row r has 0.5 at columns 2r and 2r+1 (floor mode)."""
    rows = jnp.arange(n_out)[:, None]
    cols = jnp.arange(n_in)[None, :]
    sel = (cols == 2 * rows) | (cols == 2 * rows + 1)
    return 0.5 * sel.astype(dtype)


def transition_layer(x_nchw, params):
    """Pallas implementation of TransitionLayer.forward (eval-mode BN)."""
    gamma, beta, mean, var, w_oihw = params
    N, C_in, H, W = x_nchw.shape
    C_out = w_oihw.shape[0]
    Ho, Wo = H // 2, W // 2

    # Fold eval-mode BN into the bias-free 1x1 conv.
    scale = gamma / jnp.sqrt(var + BN_EPS)                     # (C_in,)
    shift = beta - mean * scale                                # (C_in,)
    w_mat = w_oihw[:, :, 0, 0]                                 # (C_out, C_in)
    w_eff = (w_mat * scale[None, :]).reshape(C_out * C_in)     # scalars for SMEM
    b_eff = w_mat @ shift                                      # (C_out,)

    # Tiny separable pooling matrices (linear in H, W).
    ph = _avg_pair_matrix(Ho, H, jnp.float32)                  # (Ho, H)
    pw = _avg_pair_matrix(Wo, W, jnp.float32).T                # (W, Wo)

    flops = 2 * N * C_out * (C_in * H * W + Ho * H * W + Ho * W * Wo)
    bytes_accessed = 4 * (N * C_in * H * W + C_out * C_in + C_out
                          + Ho * H + W * Wo + N * C_out * Ho * Wo)
    block_bytes = 4 * (N * C_in * H * W + Ho * H + W * Wo + N * C_out * Ho * Wo)
    vmem_limit = int(min(32 * 1024 * 1024, max(1 * 1024 * 1024, 2 * block_bytes)))

    kernel = _make_transition_kernel(N, C_in, C_out)

    out = pl.pallas_call(
        kernel,
        out_shape=jax.ShapeDtypeStruct((N, C_out, Ho, Wo), x_nchw.dtype),
        in_specs=[
            pl.BlockSpec(memory_space=pltpu.MemorySpace.VMEM),   # x (whole batch)
            pl.BlockSpec(memory_space=pltpu.MemorySpace.SMEM),   # folded weights
            pl.BlockSpec(memory_space=pltpu.MemorySpace.SMEM),   # folded bias
            pl.BlockSpec(memory_space=pltpu.MemorySpace.VMEM),   # P_H
            pl.BlockSpec(memory_space=pltpu.MemorySpace.VMEM),   # P_W
        ],
        out_specs=pl.BlockSpec(memory_space=pltpu.MemorySpace.VMEM),
        compiler_params=pltpu.CompilerParams(vmem_limit_bytes=vmem_limit),
        cost_estimate=pl.CostEstimate(
            flops=flops, transcendentals=0, bytes_accessed=bytes_accessed),
    )(x_nchw, w_eff, b_eff, ph, pw)

    return out


def reference_forward(x, params):
    """Pure-JAX reference (same eval-mode BN semantics), NCHW throughout."""
    gamma, beta, mean, var, w = params
    inv = gamma / jnp.sqrt(var + BN_EPS)
    h = x * inv[None, :, None, None] + (beta - mean * inv)[None, :, None, None]
    h = lax.conv_general_dilated(h, w, (1, 1), 'VALID',
                                 dimension_numbers=('NCHW', 'OIHW', 'NCHW'))
    h = lax.reduce_window(h, 0.0, lax.add, (1, 1, 2, 2), (1, 1, 2, 2), 'VALID')
    return 0.25 * h


def init_params(key, in_channels_num, out_channels_num):
    keys = jax.random.split(key, 5)
    gamma = jax.random.uniform(keys[0], (in_channels_num,), jnp.float32, 0.5, 1.5)
    beta = 0.1 * jax.random.normal(keys[1], (in_channels_num,), jnp.float32)
    mean = 0.1 * jax.random.normal(keys[2], (in_channels_num,), jnp.float32)
    var = jax.random.uniform(keys[3], (in_channels_num,), jnp.float32, 0.5, 1.5)
    w = jax.random.normal(keys[4], (out_channels_num, in_channels_num, 1, 1),
                          jnp.float32) / jnp.sqrt(in_channels_num)
    return (gamma, beta, mean, var, w)


if __name__ == "__main__":
    # Small shapes: batch=2, in_channels=4, spatial=16x16, out_channels=2.
    N, C_IN, H, W = 2, 4, 16, 16
    C_OUT = 2

    key = jax.random.PRNGKey(0)
    k_x, k_p = jax.random.split(key)
    x = jax.random.normal(k_x, (N, C_IN, H, W), jnp.float32)   # NCHW, like PyTorch
    params = init_params(k_p, C_IN, C_OUT)

    out = jax.block_until_ready(jax.jit(transition_layer)(x, params))
    assert out.shape == (N, C_OUT, H // 2, W // 2), out.shape

    ref = jax.block_until_ready(reference_forward(x, params))
    err = float(jnp.max(jnp.abs(out - ref)))
    assert err < 1e-4, err

    print("KERNEL_OK")
</pallas_src>

<mosaic_0001>
module attributes {stable_mosaic.version = 11 : i64} {
  func.func @kernel(%arg0: memref<2x4x16x16xf32, #tpu.memory_space<vmem>>, %arg1: memref<8xf32, #tpu.memory_space<smem>>, %arg2: memref<2xf32, #tpu.memory_space<smem>>, %arg3: memref<8x16xf32, #tpu.memory_space<vmem>>, %arg4: memref<16x8xf32, #tpu.memory_space<vmem>>, %arg5: memref<2x2x8x8xf32, #tpu.memory_space<vmem>>) attributes {dimension_semantics = [], scalar_prefetch = 0 : i64, scratch_operands = 0 : i64, tpu.core_type = #tpu.core_type<tc>} {
    %c0 = arith.constant 0 : index
    %c0_0 = arith.constant 0 : index
    %0 = vector.load %arg3[%c0, %c0_0] : memref<8x16xf32, #tpu.memory_space<vmem>>, vector<8x16xf32>
    %c0_1 = arith.constant 0 : index
    %c0_2 = arith.constant 0 : index
    %1 = vector.load %arg4[%c0_1, %c0_2] : memref<16x8xf32, #tpu.memory_space<vmem>>, vector<16x8xf32>
    %c0_3 = arith.constant 0 : index
    %2 = memref.load %arg1[%c0_3] : memref<8xf32, #tpu.memory_space<smem>>
    %c0_4 = arith.constant 0 : index
    %c0_5 = arith.constant 0 : index
    %c0_6 = arith.constant 0 : index
    %c0_7 = arith.constant 0 : index
    %3 = vector.load %arg0[%c0_4, %c0_5, %c0_6, %c0_7] : memref<2x4x16x16xf32, #tpu.memory_space<vmem>>, vector<1x1x16x16xf32>
    %4 = vector.shape_cast %3 : vector<1x1x16x16xf32> to vector<16x16xf32>
    %5 = vector.broadcast %2 : f32 to vector<16x16xf32>
    %6 = arith.mulf %5, %4 : vector<16x16xf32>
    %c1 = arith.constant 1 : index
    %7 = memref.load %arg1[%c1] : memref<8xf32, #tpu.memory_space<smem>>
    %c0_8 = arith.constant 0 : index
    %c1_9 = arith.constant 1 : index
    %c0_10 = arith.constant 0 : index
    %c0_11 = arith.constant 0 : index
    %8 = vector.load %arg0[%c0_8, %c1_9, %c0_10, %c0_11] : memref<2x4x16x16xf32, #tpu.memory_space<vmem>>, vector<1x1x16x16xf32>
    %9 = vector.shape_cast %8 : vector<1x1x16x16xf32> to vector<16x16xf32>
    %10 = vector.broadcast %7 : f32 to vector<16x16xf32>
    %11 = arith.mulf %10, %9 : vector<16x16xf32>
    %12 = arith.addf %6, %11 : vector<16x16xf32>
    %c2 = arith.constant 2 : index
    %13 = memref.load %arg1[%c2] : memref<8xf32, #tpu.memory_space<smem>>
    %c0_12 = arith.constant 0 : index
    %c2_13 = arith.constant 2 : index
    %c0_14 = arith.constant 0 : index
    %c0_15 = arith.constant 0 : index
    %14 = vector.load %arg0[%c0_12, %c2_13, %c0_14, %c0_15] : memref<2x4x16x16xf32, #tpu.memory_space<vmem>>, vector<1x1x16x16xf32>
    %15 = vector.shape_cast %14 : vector<1x1x16x16xf32> to vector<16x16xf32>
    %16 = vector.broadcast %13 : f32 to vector<16x16xf32>
    %17 = arith.mulf %16, %15 : vector<16x16xf32>
    %18 = arith.addf %12, %17 : vector<16x16xf32>
    %c3 = arith.constant 3 : index
    %19 = memref.load %arg1[%c3] : memref<8xf32, #tpu.memory_space<smem>>
    %c0_16 = arith.constant 0 : index
    %c3_17 = arith.constant 3 : index
    %c0_18 = arith.constant 0 : index
    %c0_19 = arith.constant 0 : index
    %20 = vector.load %arg0[%c0_16, %c3_17, %c0_18, %c0_19] : memref<2x4x16x16xf32, #tpu.memory_space<vmem>>, vector<1x1x16x16xf32>
    %21 = vector.shape_cast %20 : vector<1x1x16x16xf32> to vector<16x16xf32>
    %22 = vector.broadcast %19 : f32 to vector<16x16xf32>
    %23 = arith.mulf %22, %21 : vector<16x16xf32>
    %24 = arith.addf %18, %23 : vector<16x16xf32>
    %cst = arith.constant dense<0.000000e+00> : vector<8x16xf32>
    %25 = tpu.matmul %0, %24, %cst {dimension_numbers = #tpu.dot_dimension_numbers<[1], [0], [0], [1], [0, 0, 1, 1], [], []>} : vector<8x16xf32>, vector<16x16xf32>, vector<8x16xf32> -> vector<8x16xf32>
    %cst_20 = arith.constant dense<0.000000e+00> : vector<8x8xf32>
    %26 = tpu.matmul %25, %1, %cst_20 {dimension_numbers = #tpu.dot_dimension_numbers<[1], [0], [0], [1], [0, 0, 1, 1], [], []>} : vector<8x16xf32>, vector<16x8xf32>, vector<8x8xf32> -> vector<8x8xf32>
    %c0_21 = arith.constant 0 : index
    %27 = memref.load %arg2[%c0_21] : memref<2xf32, #tpu.memory_space<smem>>
    %28 = vector.broadcast %27 : f32 to vector<8x8xf32>
    %29 = arith.addf %26, %28 : vector<8x8xf32>
    %c0_22 = arith.constant 0 : index
    %c0_23 = arith.constant 0 : index
    %c0_24 = arith.constant 0 : index
    %c0_25 = arith.constant 0 : index
    %30 = vector.load %arg5[%c0_22, %c0_23, %c0_24, %c0_25] : memref<2x2x8x8xf32, #tpu.memory_space<vmem>>, vector<1x1x8x8xf32>
    %31 = vector.shape_cast %30 : vector<1x1x8x8xf32> to vector<8x8xf32>
    %32 = vector.shape_cast %29 : vector<8x8xf32> to vector<1x1x8x8xf32>
    tpu.vector_store %arg5[%c0_22, %c0_23, %c0_24, %c0_25], %32 {strides = array<i32>} : memref<2x2x8x8xf32, #tpu.memory_space<vmem>>, vector<1x1x8x8xf32>,
    %c4 = arith.constant 4 : index
    %33 = memref.load %arg1[%c4] : memref<8xf32, #tpu.memory_space<smem>>
    %c0_26 = arith.constant 0 : index
    %c0_27 = arith.constant 0 : index
    %c0_28 = arith.constant 0 : index
    %c0_29 = arith.constant 0 : index
    %34 = vector.load %arg0[%c0_26, %c0_27, %c0_28, %c0_29] : memref<2x4x16x16xf32, #tpu.memory_space<vmem>>, vector<1x1x16x16xf32>
    %35 = vector.shape_cast %34 : vector<1x1x16x16xf32> to vector<16x16xf32>
    %36 = vector.broadcast %33 : f32 to vector<16x16xf32>
    %37 = arith.mulf %36, %35 : vector<16x16xf32>
    %c5 = arith.constant 5 : index
    %38 = memref.load %arg1[%c5] : memref<8xf32, #tpu.memory_space<smem>>
    %c0_30 = arith.constant 0 : index
    %c1_31 = arith.constant 1 : index
    %c0_32 = arith.constant 0 : index
    %c0_33 = arith.constant 0 : index
    %39 = vector.load %arg0[%c0_30, %c1_31, %c0_32, %c0_33] : memref<2x4x16x16xf32, #tpu.memory_space<vmem>>, vector<1x1x16x16xf32>
    %40 = vector.shape_cast %39 : vector<1x1x16x16xf32> to vector<16x16xf32>
    %41 = vector.broadcast %38 : f32 to vector<16x16xf32>
    %42 = arith.mulf %41, %40 : vector<16x16xf32>
    %43 = arith.addf %37, %42 : vector<16x16xf32>
    %c6 = arith.constant 6 : index
    %44 = memref.load %arg1[%c6] : memref<8xf32, #tpu.memory_space<smem>>
    %c0_34 = arith.constant 0 : index
    %c2_35 = arith.constant 2 : index
    %c0_36 = arith.constant 0 : index
    %c0_37 = arith.constant 0 : index
    %45 = vector.load %arg0[%c0_34, %c2_35, %c0_36, %c0_37] : memref<2x4x16x16xf32, #tpu.memory_space<vmem>>, vector<1x1x16x16xf32>
    %46 = vector.shape_cast %45 : vector<1x1x16x16xf32> to vector<16x16xf32>
    %47 = vector.broadcast %44 : f32 to vector<16x16xf32>
    %48 = arith.mulf %47, %46 : vector<16x16xf32>
    %49 = arith.addf %43, %48 : vector<16x16xf32>
    %c7 = arith.constant 7 : index
    %50 = memref.load %arg1[%c7] : memref<8xf32, #tpu.memory_space<smem>>
    %c0_38 = arith.constant 0 : index
    %c3_39 = arith.constant 3 : index
    %c0_40 = arith.constant 0 : index
    %c0_41 = arith.constant 0 : index
    %51 = vector.load %arg0[%c0_38, %c3_39, %c0_40, %c0_41] : memref<2x4x16x16xf32, #tpu.memory_space<vmem>>, vector<1x1x16x16xf32>
    %52 = vector.shape_cast %51 : vector<1x1x16x16xf32> to vector<16x16xf32>
    %53 = vector.broadcast %50 : f32 to vector<16x16xf32>
    %54 = arith.mulf %53, %52 : vector<16x16xf32>
    %55 = arith.addf %49, %54 : vector<16x16xf32>
    %cst_42 = arith.constant dense<0.000000e+00> : vector<8x16xf32>
    %56 = tpu.matmul %0, %55, %cst_42 {dimension_numbers = #tpu.dot_dimension_numbers<[1], [0], [0], [1], [0, 0, 1, 1], [], []>} : vector<8x16xf32>, vector<16x16xf32>, vector<8x16xf32> -> vector<8x16xf32>
    %cst_43 = arith.constant dense<0.000000e+00> : vector<8x8xf32>
    %57 = tpu.matmul %56, %1, %cst_43 {dimension_numbers = #tpu.dot_dimension_numbers<[1], [0], [0], [1], [0, 0, 1, 1], [], []>} : vector<8x16xf32>, vector<16x8xf32>, vector<8x8xf32> -> vector<8x8xf32>
    %c1_44 = arith.constant 1 : index
    %58 = memref.load %arg2[%c1_44] : memref<2xf32, #tpu.memory_space<smem>>
    %59 = vector.broadcast %58 : f32 to vector<8x8xf32>
    %60 = arith.addf %57, %59 : vector<8x8xf32>
    %c0_45 = arith.constant 0 : index
    %c1_46 = arith.constant 1 : index
    %c0_47 = arith.constant 0 : index
    %c0_48 = arith.constant 0 : index
    %61 = vector.load %arg5[%c0_45, %c1_46, %c0_47, %c0_48] : memref<2x2x8x8xf32, #tpu.memory_space<vmem>>, vector<1x1x8x8xf32>
    %62 = vector.shape_cast %61 : vector<1x1x8x8xf32> to vector<8x8xf32>
    %63 = vector.shape_cast %60 : vector<8x8xf32> to vector<1x1x8x8xf32>
    tpu.vector_store %arg5[%c0_45, %c1_46, %c0_47, %c0_48], %63 {strides = array<i32>} : memref<2x2x8x8xf32, #tpu.memory_space<vmem>>, vector<1x1x8x8xf32>,
    %c0_49 = arith.constant 0 : index
    %64 = memref.load %arg1[%c0_49] : memref<8xf32, #tpu.memory_space<smem>>
    %c1_50 = arith.constant 1 : index
    %c0_51 = arith.constant 0 : index
    %c0_52 = arith.constant 0 : index
    %c0_53 = arith.constant 0 : index
    %65 = vector.load %arg0[%c1_50, %c0_51, %c0_52, %c0_53] : memref<2x4x16x16xf32, #tpu.memory_space<vmem>>, vector<1x1x16x16xf32>
    %66 = vector.shape_cast %65 : vector<1x1x16x16xf32> to vector<16x16xf32>
    %67 = vector.broadcast %64 : f32 to vector<16x16xf32>
    %68 = arith.mulf %67, %66 : vector<16x16xf32>
    %c1_54 = arith.constant 1 : index
    %69 = memref.load %arg1[%c1_54] : memref<8xf32, #tpu.memory_space<smem>>
    %c1_55 = arith.constant 1 : index
    %c1_56 = arith.constant 1 : index
    %c0_57 = arith.constant 0 : index
    %c0_58 = arith.constant 0 : index
    %70 = vector.load %arg0[%c1_55, %c1_56, %c0_57, %c0_58] : memref<2x4x16x16xf32, #tpu.memory_space<vmem>>, vector<1x1x16x16xf32>
    %71 = vector.shape_cast %70 : vector<1x1x16x16xf32> to vector<16x16xf32>
    %72 = vector.broadcast %69 : f32 to vector<16x16xf32>
    %73 = arith.mulf %72, %71 : vector<16x16xf32>
    %74 = arith.addf %68, %73 : vector<16x16xf32>
    %c2_59 = arith.constant 2 : index
    %75 = memref.load %arg1[%c2_59] : memref<8xf32, #tpu.memory_space<smem>>
    %c1_60 = arith.constant 1 : index
    %c2_61 = arith.constant 2 : index
    %c0_62 = arith.constant 0 : index
    %c0_63 = arith.constant 0 : index
    %76 = vector.load %arg0[%c1_60, %c2_61, %c0_62, %c0_63] : memref<2x4x16x16xf32, #tpu.memory_space<vmem>>, vector<1x1x16x16xf32>
    %77 = vector.shape_cast %76 : vector<1x1x16x16xf32> to vector<16x16xf32>
    %78 = vector.broadcast %75 : f32 to vector<16x16xf32>
    %79 = arith.mulf %78, %77 : vector<16x16xf32>
    %80 = arith.addf %74, %79 : vector<16x16xf32>
    %c3_64 = arith.constant 3 : index
    %81 = memref.load %arg1[%c3_64] : memref<8xf32, #tpu.memory_space<smem>>
    %c1_65 = arith.constant 1 : index
    %c3_66 = arith.constant 3 : index
    %c0_67 = arith.constant 0 : index
    %c0_68 = arith.constant 0 : index
    %82 = vector.load %arg0[%c1_65, %c3_66, %c0_67, %c0_68] : memref<2x4x16x16xf32, #tpu.memory_space<vmem>>, vector<1x1x16x16xf32>
    %83 = vector.shape_cast %82 : vector<1x1x16x16xf32> to vector<16x16xf32>
    %84 = vector.broadcast %81 : f32 to vector<16x16xf32>
    %85 = arith.mulf %84, %83 : vector<16x16xf32>
    %86 = arith.addf %80, %85 : vector<16x16xf32>
    %cst_69 = arith.constant dense<0.000000e+00> : vector<8x16xf32>
    %87 = tpu.matmul %0, %86, %cst_69 {dimension_numbers = #tpu.dot_dimension_numbers<[1], [0], [0], [1], [0, 0, 1, 1], [], []>} : vector<8x16xf32>, vector<16x16xf32>, vector<8x16xf32> -> vector<8x16xf32>
    %cst_70 = arith.constant dense<0.000000e+00> : vector<8x8xf32>
    %88 = tpu.matmul %87, %1, %cst_70 {dimension_numbers = #tpu.dot_dimension_numbers<[1], [0], [0], [1], [0, 0, 1, 1], [], []>} : vector<8x16xf32>, vector<16x8xf32>, vector<8x8xf32> -> vector<8x8xf32>
    %c0_71 = arith.constant 0 : index
    %89 = memref.load %arg2[%c0_71] : memref<2xf32, #tpu.memory_space<smem>>
    %90 = vector.broadcast %89 : f32 to vector<8x8xf32>
    %91 = arith.addf %88, %90 : vector<8x8xf32>
    %c1_72 = arith.constant 1 : index
    %c0_73 = arith.constant 0 : index
    %c0_74 = arith.constant 0 : index
    %c0_75 = arith.constant 0 : index
    %92 = vector.load %arg5[%c1_72, %c0_73, %c0_74, %c0_75] : memref<2x2x8x8xf32, #tpu.memory_space<vmem>>, vector<1x1x8x8xf32>
    %93 = vector.shape_cast %92 : vector<1x1x8x8xf32> to vector<8x8xf32>
    %94 = vector.shape_cast %91 : vector<8x8xf32> to vector<1x1x8x8xf32>
    tpu.vector_store %arg5[%c1_72, %c0_73, %c0_74, %c0_75], %94 {strides = array<i32>} : memref<2x2x8x8xf32, #tpu.memory_space<vmem>>, vector<1x1x8x8xf32>,
    %c4_76 = arith.constant 4 : index
    %95 = memref.load %arg1[%c4_76] : memref<8xf32, #tpu.memory_space<smem>>
    %c1_77 = arith.constant 1 : index
    %c0_78 = arith.constant 0 : index
    %c0_79 = arith.constant 0 : index
    %c0_80 = arith.constant 0 : index
    %96 = vector.load %arg0[%c1_77, %c0_78, %c0_79, %c0_80] : memref<2x4x16x16xf32, #tpu.memory_space<vmem>>, vector<1x1x16x16xf32>
    %97 = vector.shape_cast %96 : vector<1x1x16x16xf32> to vector<16x16xf32>
    %98 = vector.broadcast %95 : f32 to vector<16x16xf32>
    %99 = arith.mulf %98, %97 : vector<16x16xf32>
    %c5_81 = arith.constant 5 : index
    %100 = memref.load %arg1[%c5_81] : memref<8xf32, #tpu.memory_space<smem>>
    %c1_82 = arith.constant 1 : index
    %c1_83 = arith.constant 1 : index
    %c0_84 = arith.constant 0 : index
    %c0_85 = arith.constant 0 : index
    %101 = vector.load %arg0[%c1_82, %c1_83, %c0_84, %c0_85] : memref<2x4x16x16xf32, #tpu.memory_space<vmem>>, vector<1x1x16x16xf32>
    %102 = vector.shape_cast %101 : vector<1x1x16x16xf32> to vector<16x16xf32>
    %103 = vector.broadcast %100 : f32 to vector<16x16xf32>
    %104 = arith.mulf %103, %102 : vector<16x16xf32>
    %105 = arith.addf %99, %104 : vector<16x16xf32>
    %c6_86 = arith.constant 6 : index
    %106 = memref.load %arg1[%c6_86] : memref<8xf32, #tpu.memory_space<smem>>
    %c1_87 = arith.constant 1 : index
    %c2_88 = arith.constant 2 : index
    %c0_89 = arith.constant 0 : index
    %c0_90 = arith.constant 0 : index
    %107 = vector.load %arg0[%c1_87, %c2_88, %c0_89, %c0_90] : memref<2x4x16x16xf32, #tpu.memory_space<vmem>>, vector<1x1x16x16xf32>
    %108 = vector.shape_cast %107 : vector<1x1x16x16xf32> to vector<16x16xf32>
    %109 = vector.broadcast %106 : f32 to vector<16x16xf32>
    %110 = arith.mulf %109, %108 : vector<16x16xf32>
    %111 = arith.addf %105, %110 : vector<16x16xf32>
    %c7_91 = arith.constant 7 : index
    %112 = memref.load %arg1[%c7_91] : memref<8xf32, #tpu.memory_space<smem>>
    %c1_92 = arith.constant 1 : index
    %c3_93 = arith.constant 3 : index
    %c0_94 = arith.constant 0 : index
    %c0_95 = arith.constant 0 : index
    %113 = vector.load %arg0[%c1_92, %c3_93, %c0_94, %c0_95] : memref<2x4x16x16xf32, #tpu.memory_space<vmem>>, vector<1x1x16x16xf32>
    %114 = vector.shape_cast %113 : vector<1x1x16x16xf32> to vector<16x16xf32>
    %115 = vector.broadcast %112 : f32 to vector<16x16xf32>
    %116 = arith.mulf %115, %114 : vector<16x16xf32>
    %117 = arith.addf %111, %116 : vector<16x16xf32>
    %cst_96 = arith.constant dense<0.000000e+00> : vector<8x16xf32>
    %118 = tpu.matmul %0, %117, %cst_96 {dimension_numbers = #tpu.dot_dimension_numbers<[1], [0], [0], [1], [0, 0, 1, 1], [], []>} : vector<8x16xf32>, vector<16x16xf32>, vector<8x16xf32> -> vector<8x16xf32>
    %cst_97 = arith.constant dense<0.000000e+00> : vector<8x8xf32>
    %119 = tpu.matmul %118, %1, %cst_97 {dimension_numbers = #tpu.dot_dimension_numbers<[1], [0], [0], [1], [0, 0, 1, 1], [], []>} : vector<8x16xf32>, vector<16x8xf32>, vector<8x8xf32> -> vector<8x8xf32>
    %c1_98 = arith.constant 1 : index
    %120 = memref.load %arg2[%c1_98] : memref<2xf32, #tpu.memory_space<smem>>
    %121 = vector.broadcast %120 : f32 to vector<8x8xf32>
    %122 = arith.addf %119, %121 : vector<8x8xf32>
    %c1_99 = arith.constant 1 : index
    %c1_100 = arith.constant 1 : index
    %c0_101 = arith.constant 0 : index
    %c0_102 = arith.constant 0 : index
    %123 = vector.load %arg5[%c1_99, %c1_100, %c0_101, %c0_102] : memref<2x2x8x8xf32, #tpu.memory_space<vmem>>, vector<1x1x8x8xf32>
    %124 = vector.shape_cast %123 : vector<1x1x8x8xf32> to vector<8x8xf32>
    %125 = vector.shape_cast %122 : vector<8x8xf32> to vector<1x1x8x8xf32>
    tpu.vector_store %arg5[%c1_99, %c1_100, %c0_101, %c0_102], %125 {strides = array<i32>} : memref<2x2x8x8xf32, #tpu.memory_space<vmem>>, vector<1x1x8x8xf32>,
    return
  }
}

</mosaic_0001>

<llo_original>
// kernel: mul.2
$region0: #{mul.2}
  #allocation0 [shape = 's32[1]{0}', space=sflag, size = 0x4, scoped, tag = 'scoped memory for mul.2']
  %s0 = inlined_call_operand.vmem [shape: f32[8], index: 0, kind: input, shape index: {}]
  %s1 = inlined_call_operand.vmem [shape: f32[8], index: 1, kind: input, shape index: {}]
  %s2 = inlined_call_operand.vmem [shape: f32[8], index: 2, kind: output, shape index: {}]
  %v3 = vld [vmem:[%s0] sm:$0x1]
  %v4 = vld [vmem:[%s1] sm:$0x1]
  %5 = xla_tuple %v3, %v4
  %6 = xla_tuple %5
  %v7 = vmul.f32 %v3, %v4
  %8 = xla_tuple %v7
  %9 = vst [vmem:[%s2] sm:$0x1] %v7

// kernel: transition_layer.1
$region0: #{transition_layer.1}
  #allocation0 [shape = 'u32[]', space=smem, size = 0x4, offset = 0x4, fixed_abs, tag = 'smem constant byte address 0x4 - core index']
  #allocation1 [shape = 'u32[72,128]{1,0:T(1,128)}', space=vmem, size = 0x9000, scoped, tag = 'internal scratch']
  %s0 = inlined_call_operand.hbm [shape: f32[2,4,16,16], index: 0, kind: input, shape index: {}]
  %s1 = inlined_call_operand.vmem [shape: f32[8], index: 1, kind: input, shape index: {}]
  %s2 = inlined_call_operand.vmem [shape: f32[2], index: 2, kind: input, shape index: {}]
  %s3 = inlined_call_operand.vmem [shape: f32[8,16], index: 3, kind: input, shape index: {}]
  %s4 = inlined_call_operand.vmem [shape: f32[16,8], index: 4, kind: input, shape index: {}]
  %s5 = inlined_call_operand.hbm [shape: f32[2,2,8,8], index: 5, kind: output, shape index: {}]
  %s6 = sld [smem:[#allocation0]]
  $region42: #{transition_layer.1} parent=0
    _
  %s8 = ssub.s32 1, %s6
  %s9 = scalar_select 0, %s8, %s6
  $region1: #{transition_layer.1} parent=0
    #allocation2 [shape = 'u8[65536]{0}', space=vmem, size = 0x10000, scoped, tag = 'input window, operand 0, single buffered']
    #allocation3 [shape = 's32[1]{0}', space=sflag, size = 0x4, scoped, tag = 'scoped memory for transition_layer.1']
    #allocation4 [shape = 's32[1]{0}', space=sflag, size = 0x4, scoped, tag = 'scoped memory for transition_layer.1']
    #allocation5 [shape = 's32[1]{0}', space=sflag, size = 0x4, scoped, tag = 'scoped memory for transition_layer.1']
    #allocation6 [shape = 'u8[512]{0}', space=smem, size = 0x200, scoped, tag = 'input window, operand 1, single buffered']
    #allocation7 [shape = 'u8[512]{0}', space=smem, size = 0x200, scoped, tag = 'input window, operand 2, single buffered']
    #allocation8 [shape = 's32[1]{0}', space=sflag, size = 0x4, scoped, tag = 'scoped memory for transition_layer.1']
    #allocation9 [shape = 'u8[16384]{0}', space=vmem, size = 0x4000, scoped, tag = 'output window, operand 0, single buffered']
    %10 = vsyncpa [#allocation3], 0
    %11 = vsyncpa [#allocation5], 0
    %12 = vsyncpa [#allocation8], 0
    %13 = vsyncpa [#allocation4], 0
    // Predicated region
    $region2: #{transition_layer.1} parent=1 // pred_check
      _
    $region3: #{transition_layer.1} parent=1 // pred_check_branch
      %15 = sbr.rel (0) target = $region5
    $region4: #{transition_layer.1} parent=1 // pred_region
      %17 = vsyncadd [#allocation3], 0
      %s18 = sshll.u32 %s0, 4
      %s19 = int_to_ptr.hbm [resolvable:$true] %s18
      %s20 = sshll.u32 [#allocation2], 4
      %s21 = int_to_ptr.vmem [resolvable:$true] %s20
      %26 = dma.hbm_to_vmem [thread:$0]  %s19, 2048, %s21, [#allocation3], 128, 128, 8
    $region5: #{transition_layer.1} parent=1 // pred_fallthru
      _
    // Predicated region
    $region6: #{transition_layer.1} parent=1 // pred_check
      _
    $region7: #{transition_layer.1} parent=1 // pred_check_branch
      %28 = sbr.rel (0) target = $region9
    $region8: #{transition_layer.1} parent=1 // pred_region
      %30 = vsyncadd [#allocation5], 0
      %s32 = sshll.u32 %s1, 4
      %s33 = int_to_ptr.vmem [resolvable:$true] %s32
      %35 = dma.vmem_to_smem %s33, 16, [#allocation6], [#allocation5]
    $region9: #{transition_layer.1} parent=1 // pred_fallthru
      _
    // Predicated region
    $region10: #{transition_layer.1} parent=1 // pred_check
      _
    $region11: #{transition_layer.1} parent=1 // pred_check_branch
      %37 = sbr.rel (0) target = $region13
    $region12: #{transition_layer.1} parent=1 // pred_region
      %39 = vsyncadd [#allocation8], 0
      %s41 = sshll.u32 %s2, 4
      %s42 = int_to_ptr.vmem [resolvable:$true] %s41
      %44 = dma.vmem_to_smem %s42, 16, [#allocation7], [#allocation8]
    $region13: #{transition_layer.1} parent=1 // pred_fallthru
      _
    // Predicated region
    $region14: #{transition_layer.1} parent=1 // pred_check
      _
    $region15: #{transition_layer.1} parent=1 // pred_check_branch
      %46 = sbr.rel (0) target = $region17
    $region16: #{transition_layer.1} parent=1 // pred_region
      _
    $region17: #{transition_layer.1} parent=1 // pred_fallthru
      _
    // Predicated region
    $region18: #{transition_layer.1} parent=1 // pred_check
      _
    $region19: #{transition_layer.1} parent=1 // pred_check_branch
      %48 = sbr.rel (0) target = $region21
    $region20: #{transition_layer.1} parent=1 // pred_region
      _
    $region21: #{transition_layer.1} parent=1 // pred_fallthru
      _
    // Predicated region
    $region22: #{transition_layer.1} parent=1 // pred_check
      _
    $region23: #{transition_layer.1} parent=1 // pred_check_branch
      %50 = sbr.rel (0) target = $region25
    $region24: #{transition_layer.1} parent=1 // pred_region
      %52 = dma.done [#allocation3], 2048
    $region25: #{transition_layer.1} parent=1 // pred_fallthru
      _
    // Predicated region
    $region26: #{transition_layer.1} parent=1 // pred_check
      _
    $region27: #{transition_layer.1} parent=1 // pred_check_branch
      %54 = sbr.rel (0) target = $region29
    $region28: #{transition_layer.1} parent=1 // pred_region
      %56 = dma.done [#allocation5], 16
    $region29: #{transition_layer.1} parent=1 // pred_fallthru
      _
    // Predicated region
    $region30: #{transition_layer.1} parent=1 // pred_check
      _
    $region31: #{transition_layer.1} parent=1 // pred_check_branch
      %58 = sbr.rel (0) target = $region33
    $region32: #{transition_layer.1} parent=1 // pred_region
      %60 = dma.done [#allocation8], 16
    $region33: #{transition_layer.1} parent=1 // pred_fallthru
      _
    %61 = sfence
    %v62 = vld [vmem:[%s3] sm:$0xff]
    %v63 = vld [vmem:[%s4] sm:$0xff]
    %v64 = vld [vmem:[%s4 + $0x8] sm:$0xff]
    %s65 = sld [smem:[#allocation6]]
    %v66 = vld [vmem:[#allocation2] sm:$0xff]
    %v67 = vld [vmem:[#allocation2 + $0x8] sm:$0xff]
    %v68 = vstv %s65
    %v69 = vmul.f32 %v68, %v66
    %v70 = vmul.f32 %v68, %v67
    %s71 = sld [smem:[#allocation6 + $0x1]]
    %s72 = scalar_lea.vmem [#allocation2], 16
    %v73 = vld [vmem:[%s72] sm:$0xff]
    %v74 = vld [vmem:[%s72 + $0x8] sm:$0xff]
    %v75 = vstv %s71
    %v76 = vmul.f32 %v75, %v73
    %v77 = vmul.f32 %v75, %v74
    %v78 = vadd.f32 %v69, %v76
    %v79 = vadd.f32 %v70, %v77
    %s80 = sld [smem:[#allocation6 + $0x2]]
    %s81 = scalar_lea.vmem [#allocation2], 32
    %v82 = vld [vmem:[%s81] sm:$0xff]
    %v83 = vld [vmem:[%s81 + $0x8] sm:$0xff]
    %v84 = vstv %s80
    %v85 = vmul.f32 %v84, %v82
    %v86 = vmul.f32 %v84, %v83
    %v87 = vadd.f32 %v78, %v85
    %v88 = vadd.f32 %v79, %v86
    %s89 = sld [smem:[#allocation6 + $0x3]]
    %s90 = scalar_lea.vmem [#allocation2], 48
    %v91 = vld [vmem:[%s90] sm:$0xff]
    %v92 = vld [vmem:[%s90 + $0x8] sm:$0xff]
    %v93 = vstv %s89
    %v94 = vmul.f32 %v93, %v91
    %v95 = vmul.f32 %v93, %v92
    %v96 = vadd.f32 %v87, %v94
    %v97 = vadd.f32 %v88, %v95
    %vm98 = vcmask 130048
    %v100 = vsel %vm98, %v62, 0
    %102 = vmatpush.msra.mxu0 0.0
    %103 = vmatpush.msra.mxu0 0.0
    %104 = vmatpush.msra.mxu0 0.0
    %105 = vmatpush.msra.mxu0 0.0
    %106 = vmatpush.msra.mxu0 0.0
    %107 = vmatpush.msra.mxu0 0.0
    %108 = vmatpush.msra.mxu0 0.0
    %109 = vmatpush.msra.mxu0 0.0
    %110 = vmatpush.msra.mxu0 0.0
    %111 = vmatpush.msra.mxu0 0.0
    %112 = vmatpush.msra.mxu0 0.0
    %113 = vmatpush.msra.mxu0 0.0
    %114 = vmatpush.msra.mxu0 0.0
    %115 = vmatpush.msra.mxu0 0.0
    %116 = vmatpush.msra.mxu0 %v97
    %117 = vmatpush.msra.mxu0 %v96
    %118 = vmatmul.f32.gmra.mxu0 %v100
    %v119 = vpop.f32.mrf.mxu0
    %v120 = vadd.f32 0.0, %v119
    %121 = vdwg.mxu0
    %s122 = sld [smem:[#allocation7]]
    %v123 = vstv %s122
    %v125 = vsel %vm98, %v120, 0
    %127 = vmatpush.msra.mxu0 0.0
    %128 = vmatpush.msra.mxu0 0.0
    %129 = vmatpush.msra.mxu0 0.0
    %130 = vmatpush.msra.mxu0 0.0
    %131 = vmatpush.msra.mxu0 0.0
    %132 = vmatpush.msra.mxu0 0.0
    %133 = vmatpush.msra.mxu0 0.0
    %134 = vmatpush.msra.mxu0 0.0
    %135 = vmatpush.msra.mxu0 0.0
    %136 = vmatpush.msra.mxu0 0.0
    %137 = vmatpush.msra.mxu0 0.0
    %138 = vmatpush.msra.mxu0 0.0
    %139 = vmatpush.msra.mxu0 0.0
    %140 = vmatpush.msra.mxu0 0.0
    %141 = vmatpush.msra.mxu0 %v64
    %142 = vmatpush.msra.mxu0 %v63
    %143 = vmatmul.f32.gmra.mxu0 %v125
    %v144 = vpop.f32.mrf.mxu0
    %v145 = vadd.f32 %v123, %v144
    %146 = vdwg.mxu0
    %vm147 = vcmask 64512
    %148 = vst.msk [vmem:[#allocation9] sm:$0xff] %vm147, %v145
    %s149 = sld [smem:[#allocation6 + $0x4]]
    %v150 = vld [vmem:[#allocation2] sm:$0xff]
    %v151 = vld [vmem:[#allocation2 + $0x8] sm:$0xff]
    %v152 = vstv %s149
    %v153 = vmul.f32 %v152, %v150
    %v154 = vmul.f32 %v152, %v151
    %s155 = sld [smem:[#allocation6 + $0x5]]
    %v156 = vld [vmem:[%s72] sm:$0xff]
    %v157 = vld [vmem:[%s72 + $0x8] sm:$0xff]
    %v158 = vstv %s155
    %v159 = vmul.f32 %v158, %v156
    %v160 = vmul.f32 %v158, %v157
    %v161 = vadd.f32 %v153, %v159
    %v162 = vadd.f32 %v154, %v160
    %s163 = sld [smem:[#allocation6 + $0x6]]
    %v164 = vld [vmem:[%s81] sm:$0xff]
    %v165 = vld [vmem:[%s81 + $0x8] sm:$0xff]
    %v166 = vstv %s163
    %v167 = vmul.f32 %v166, %v164
    %v168 = vmul.f32 %v166, %v165
    %v169 = vadd.f32 %v161, %v167
    %v170 = vadd.f32 %v162, %v168
    %s171 = sld [smem:[#allocation6 + $0x7]]
    %v172 = vld [vmem:[%s90] sm:$0xff]
    %v173 = vld [vmem:[%s90 + $0x8] sm:$0xff]
    %v174 = vstv %s171
    %v175 = vmul.f32 %v174, %v172
    %v176 = vmul.f32 %v174, %v173
    %v177 = vadd.f32 %v169, %v175
    %v178 = vadd.f32 %v170, %v176
    %179 = vmatpush.msra.mxu0 0.0
    %180 = vmatpush.msra.mxu0 0.0
    %181 = vmatpush.msra.mxu0 0.0
    %182 = vmatpush.msra.mxu0 0.0
    %183 = vmatpush.msra.mxu0 0.0
    %184 = vmatpush.msra.mxu0 0.0
    %185 = vmatpush.msra.mxu0 0.0
    %186 = vmatpush.msra.mxu0 0.0
    %187 = vmatpush.msra.mxu0 0.0
    %188 = vmatpush.msra.mxu0 0.0
    %189 = vmatpush.msra.mxu0 0.0
    %190 = vmatpush.msra.mxu0 0.0
    %191 = vmatpush.msra.mxu0 0.0
    %192 = vmatpush.msra.mxu0 0.0
    %193 = vmatpush.msra.mxu0 %v178
    %194 = vmatpush.msra.mxu0 %v177
    %195 = vmatmul.f32.gmra.mxu0 %v100
    %v196 = vpop.f32.mrf.mxu0
    %v197 = vadd.f32 0.0, %v196
    %198 = vdwg.mxu0
    %s199 = sld [smem:[#allocation7 + $0x1]]
    %v200 = vstv %s199
    %v202 = vsel %vm98, %v197, 0
    %204 = vmatpush.msra.mxu0 0.0
    %205 = vmatpush.msra.mxu0 0.0
    %206 = vmatpush.msra.mxu0 0.0
    %207 = vmatpush.msra.mxu0 0.0
    %208 = vmatpush.msra.mxu0 0.0
    %209 = vmatpush.msra.mxu0 0.0
    %210 = vmatpush.msra.mxu0 0.0
    %211 = vmatpush.msra.mxu0 0.0
    %212 = vmatpush.msra.mxu0 0.0
    %213 = vmatpush.msra.mxu0 0.0
    %214 = vmatpush.msra.mxu0 0.0
    %215 = vmatpush.msra.mxu0 0.0
    %216 = vmatpush.msra.mxu0 0.0
    %217 = vmatpush.msra.mxu0 0.0
    %218 = vmatpush.msra.mxu0 %v64
    %219 = vmatpush.msra.mxu0 %v63
    %220 = vmatmul.f32.gmra.mxu0 %v202
    %v221 = vpop.f32.mrf.mxu0
    %v222 = vadd.f32 %v200, %v221
    %223 = vdwg.mxu0
    %s224 = scalar_lea.vmem [#allocation9], 8
    %225 = vst.msk [vmem:[%s224] sm:$0xff] %vm147, %v222
    %s226 = sld [smem:[#allocation6]]
    %s227 = scalar_lea.vmem [#allocation2], 64
    %v228 = vld [vmem:[%s227] sm:$0xff]
    %v229 = vld [vmem:[%s227 + $0x8] sm:$0xff]
    %v230 = vstv %s226
    %v231 = vmul.f32 %v230, %v228
    %v232 = vmul.f32 %v230, %v229
    %s233 = sld [smem:[#allocation6 + $0x1]]
    %s234 = scalar_lea.vmem [#allocation2], 80
    %v235 = vld [vmem:[%s234] sm:$0xff]
    %v236 = vld [vmem:[%s234 + $0x8] sm:$0xff]
    %v237 = vstv %s233
    %v238 = vmul.f32 %v237, %v235
    %v239 = vmul.f32 %v237, %v236
    %v240 = vadd.f32 %v231, %v238
    %v241 = vadd.f32 %v232, %v239
    %s242 = sld [smem:[#allocation6 + $0x2]]
    %s243 = scalar_lea.vmem [#allocation2], 96
    %v244 = vld [vmem:[%s243] sm:$0xff]
    %v245 = vld [vmem:[%s243 + $0x8] sm:$0xff]
    %v246 = vstv %s242
    %v247 = vmul.f32 %v246, %v244
    %v248 = vmul.f32 %v246, %v245
    %v249 = vadd.f32 %v240, %v247
    %v250 = vadd.f32 %v241, %v248
    %s251 = sld [smem:[#allocation6 + $0x3]]
    %s252 = scalar_lea.vmem [#allocation2], 112
    %v253 = vld [vmem:[%s252] sm:$0xff]
    %v254 = vld [vmem:[%s252 + $0x8] sm:$0xff]
    %v255 = vstv %s251
    %v256 = vmul.f32 %v255, %v253
    %v257 = vmul.f32 %v255, %v254
    %v258 = vadd.f32 %v249, %v256
    %v259 = vadd.f32 %v250, %v257
    %260 = vmatpush.msra.mxu0 0.0
    %261 = vmatpush.msra.mxu0 0.0
    %262 = vmatpush.msra.mxu0 0.0
    %263 = vmatpush.msra.mxu0 0.0
    %264 = vmatpush.msra.mxu0 0.0
    %265 = vmatpush.msra.mxu0 0.0
    %266 = vmatpush.msra.mxu0 0.0
    %267 = vmatpush.msra.mxu0 0.0
    %268 = vmatpush.msra.mxu0 0.0
    %269 = vmatpush.msra.mxu0 0.0
    %270 = vmatpush.msra.mxu0 0.0
    %271 = vmatpush.msra.mxu0 0.0
    %272 = vmatpush.msra.mxu0 0.0
    %273 = vmatpush.msra.mxu0 0.0
    %274 = vmatpush.msra.mxu0 %v259
    %275 = vmatpush.msra.mxu0 %v258
    %276 = vmatmul.f32.gmra.mxu0 %v100
    %v277 = vpop.f32.mrf.mxu0
    %v278 = vadd.f32 0.0, %v277
    %279 = vdwg.mxu0
    %s280 = sld [smem:[#allocation7]]
    %v281 = vstv %s280
    %v283 = vsel %vm98, %v278, 0
    %285 = vmatpush.msra.mxu0 0.0
    %286 = vmatpush.msra.mxu0 0.0
    %287 = vmatpush.msra.mxu0 0.0
    %288 = vmatpush.msra.mxu0 0.0
    %289 = vmatpush.msra.mxu0 0.0
    %290 = vmatpush.msra.mxu0 0.0
    %291 = vmatpush.msra.mxu0 0.0
    %292 = vmatpush.msra.mxu0 0.0
    %293 = vmatpush.msra.mxu0 0.0
    %294 = vmatpush.msra.mxu0 0.0
    %295 = vmatpush.msra.mxu0 0.0
    %296 = vmatpush.msra.mxu0 0.0
    %297 = vmatpush.msra.mxu0 0.0
    %298 = vmatpush.msra.mxu0 0.0
    %299 = vmatpush.msra.mxu0 %v64
    %300 = vmatpush.msra.mxu0 %v63
    %301 = vmatmul.f32.gmra.mxu0 %v283
    %v302 = vpop.f32.mrf.mxu0
    %v303 = vadd.f32 %v281, %v302
    %304 = vdwg.mxu0
    %s305 = scalar_lea.vmem [#allocation9], 16
    %306 = vst.msk [vmem:[%s305] sm:$0xff] %vm147, %v303
    %s307 = sld [smem:[#allocation6 + $0x4]]
    %v308 = vld [vmem:[%s227] sm:$0xff]
    %v309 = vld [vmem:[%s227 + $0x8] sm:$0xff]
    %v310 = vstv %s307
    %v311 = vmul.f32 %v310, %v308
    %v312 = vmul.f32 %v310, %v309
    %s313 = sld [smem:[#allocation6 + $0x5]]
    %v314 = vld [vmem:[%s234] sm:$0xff]
    %v315 = vld [vmem:[%s234 + $0x8] sm:$0xff]
    %v316 = vstv %s313
    %v317 = vmul.f32 %v316, %v314
    %v318 = vmul.f32 %v316, %v315
    %v319 = vadd.f32 %v311, %v317
    %v320 = vadd.f32 %v312, %v318
    %s321 = sld [smem:[#allocation6 + $0x6]]
    %v322 = vld [vmem:[%s243] sm:$0xff]
    %v323 = vld [vmem:[%s243 + $0x8] sm:$0xff]
    %v324 = vstv %s321
    %v325 = vmul.f32 %v324, %v322
    %v326 = vmul.f32 %v324, %v323
    %v327 = vadd.f32 %v319, %v325
    %v328 = vadd.f32 %v320, %v326
    %s329 = sld [smem:[#allocation6 + $0x7]]
    %v330 = vld [vmem:[%s252] sm:$0xff]
    %v331 = vld [vmem:[%s252 + $0x8] sm:$0xff]
    %v332 = vstv %s329
    %v333 = vmul.f32 %v332, %v330
    %v334 = vmul.f32 %v332, %v331
    %v335 = vadd.f32 %v327, %v333
    %v336 = vadd.f32 %v328, %v334
    %337 = vmatpush.msra.mxu0 0.0
    %338 = vmatpush.msra.mxu0 0.0
    %339 = vmatpush.msra.mxu0 0.0
    %340 = vmatpush.msra.mxu0 0.0
    %341 = vmatpush.msra.mxu0 0.0
    %342 = vmatpush.msra.mxu0 0.0
    %343 = vmatpush.msra.mxu0 0.0
    %344 = vmatpush.msra.mxu0 0.0
    %345 = vmatpush.msra.mxu0 0.0
    %346 = vmatpush.msra.mxu0 0.0
    %347 = vmatpush.msra.mxu0 0.0
    %348 = vmatpush.msra.mxu0 0.0
    %349 = vmatpush.msra.mxu0 0.0
    %350 = vmatpush.msra.mxu0 0.0
    %351 = vmatpush.msra.mxu0 %v336
    %352 = vmatpush.msra.mxu0 %v335
    %353 = vmatmul.f32.gmra.mxu0 %v100
    %v354 = vpop.f32.mrf.mxu0
    %v355 = vadd.f32 0.0, %v354
    %356 = vdwg.mxu0
    %s357 = sld [smem:[#allocation7 + $0x1]]
    %v358 = vstv %s357
    %v360 = vsel %vm98, %v355, 0
    %362 = vmatpush.msra.mxu0 0.0
    %363 = vmatpush.msra.mxu0 0.0
    %364 = vmatpush.msra.mxu0 0.0
    %365 = vmatpush.msra.mxu0 0.0
    %366 = vmatpush.msra.mxu0 0.0
    %367 = vmatpush.msra.mxu0 0.0
    %368 = vmatpush.msra.mxu0 0.0
    %369 = vmatpush.msra.mxu0 0.0
    %370 = vmatpush.msra.mxu0 0.0
    %371 = vmatpush.msra.mxu0 0.0
    %372 = vmatpush.msra.mxu0 0.0
    %373 = vmatpush.msra.mxu0 0.0
    %374 = vmatpush.msra.mxu0 0.0
    %375 = vmatpush.msra.mxu0 0.0
    %376 = vmatpush.msra.mxu0 %v64
    %377 = vmatpush.msra.mxu0 %v63
    %378 = vmatmul.f32.gmra.mxu0 %v360
    %v379 = vpop.f32.mrf.mxu0
    %v380 = vadd.f32 %v358, %v379
    %381 = vdwg.mxu0
    %s382 = scalar_lea.vmem [#allocation9], 24
    %383 = vst.msk [vmem:[%s382] sm:$0xff] %vm147, %v380
    // Predicated region
    $region34: #{transition_layer.1} parent=1 // pred_check
      _
    $region35: #{transition_layer.1} parent=1 // pred_check_branch
      %385 = sbr.rel (0) target = $region37
    $region36: #{transition_layer.1} parent=1 // pred_region
      %387 = vsyncadd [#allocation4], 0
      %s388 = sshll.u32 [#allocation9], 4
      %s389 = int_to_ptr.vmem [resolvable:$true] %s388
      %s390 = sshll.u32 %s5, 4
      %s391 = int_to_ptr.hbm [resolvable:$true] %s390
      %396 = dma.vmem_to_hbm [thread:$0]  %s389, 512, %s391, [#allocation4], 128, 128, 8
    $region37: #{transition_layer.1} parent=1 // pred_fallthru
      _
    // Predicated region
    $region38: #{transition_layer.1} parent=1 // pred_check
      _
    $region39: #{transition_layer.1} parent=1 // pred_check_branch
      %398 = sbr.rel (0) target = $region41
    $region40: #{transition_layer.1} parent=1 // pred_region
      %400 = dma.done [#allocation4], 512
    $region41: #{transition_layer.1} parent=1 // pred_fallthru
      _
    %401 = vsyncpa [#allocation3], 1
    %402 = vsyncpa [#allocation4], 1
    %403 = vsyncpa [#allocation5], 1
    %404 = vsyncpa [#allocation8], 1

</llo_original>
